<compile_context>
chip_gen: v7x
topology: tpu7x:2x2x1
jax: 0.10.0
libtpu: 0.0.40
codegen_flags: <defaults>
</compile_context>

<pallas_src>
import functools
import numpy as np

import jax
import jax.numpy as jnp
from jax.experimental import pallas as pl
from jax.experimental.pallas import tpu as pltpu


LANE = 128            # lane width (hidden / output slab width)
OUT_PAD = 128         # lane-dense output slab width
TILE_B_DEFAULT = 1024

SELU_ALPHA = 1.6732632423543772
SELU_SCALE = 1.0507009873554805


def _round_up(x, m):
    return ((x + m - 1) // m) * m


def _selu(x):
    # torch.nn.SELU; clamp the exp arg so the discarded positive branch never
    # produces inf.  (exp-1 kept instead of expm1 for lowering safety.)
    return SELU_SCALE * jnp.where(
        x > 0, x, SELU_ALPHA * (jnp.exp(jnp.minimum(x, 0.0)) - 1.0))


# ----------------------------------------------------------------------------
# Kernel
# ----------------------------------------------------------------------------
def _make_kernel(n_rest, act_dim, fuse_logprob):
    """Combined (actor+critic, block-diagonal) MLP on one x batch tile.

    Refs (in order):
      x_ref      (tb, d_in)          f32   observation tile (natural width)
      w1_ref     (d_in, LANE)        cdt   packed first-layer weights
      wrest_ref  (n_rest, LANE, LANE)cdt   packed layers 2..L (block-diag)
      b_ref      (L, 1, LANE)        f32   packed biases
      [act_ref   (tb, act_dim)       f32   actions tile     (evaluate only)]
      [invd_ref  (1, act_dim)        f32   1/diag(scale_tril) (evaluate only)]
      o_ref      (tb, OUT_PAD)       f32   lane-dense output slab
    """
    def kernel(*refs):
        if fuse_logprob:
            x_ref, w1_ref, wrest_ref, b_ref, act_ref, invd_ref, o_ref = refs
        else:
            x_ref, w1_ref, wrest_ref, b_ref, o_ref = refs

        cdt = w1_ref.dtype                       # MXU operand dtype (f32/bf16)
        x = x_ref[...].astype(cdt)

        # layer 1
        h = jnp.dot(x, w1_ref[...], preferred_element_type=jnp.float32)
        h = _selu(h + b_ref[0])
        # layers 2..L (stacked, block-diagonal); SELU on all but the last
        for i in range(n_rest):
            z = jnp.dot(h.astype(cdt), wrest_ref[i],
                        preferred_element_type=jnp.float32) + b_ref[i + 1]
            h = _selu(z) if i < n_rest - 1 else z
        out = h   # f32: actor mean lanes [0,act_dim), value lane act_dim, rest 0

        if fuse_logprob:
            # MultivariateNormal(mean, scale_tril=diag(exp(log_std)^2)):
            # quadratic form of log_prob, written into lane act_dim+1.
            mean = out[:, :act_dim]
            zr = (act_ref[...] - mean) * invd_ref[...]
            quad = jnp.sum(zr * zr, axis=-1, keepdims=True)        # (tb, 1)
            lane = jax.lax.broadcasted_iota(jnp.int32, (1, OUT_PAD), 1)
            out = out + jnp.where(lane == act_dim + 1, -0.5 * quad, 0.0)

        o_ref[...] = out.astype(o_ref.dtype)

    return kernel


# ----------------------------------------------------------------------------
# Wrapper around pallas_call
# ----------------------------------------------------------------------------
def _choose_batch_tile(batch, tile_b, row_align):
    """Batch tile: sublane-aligned, <= tile_b, divides the aligned batch when
    possible so the last block isn't nearly empty."""
    b_al = _round_up(batch, row_align)
    tile_cap = _round_up(min(tile_b, b_al), row_align)
    if b_al <= tile_cap:
        return b_al, b_al
    t = tile_cap
    while t > row_align and b_al % t != 0:
        t -= row_align
    if b_al % t != 0:
        t = tile_cap                      # fall back: pad the last block
    return t, _round_up(b_al, t)


def fused_forward(x, w1, w_rest, b_all, *, actions=None, inv_diag=None,
                  act_dim, tile_b=TILE_B_DEFAULT):
    """Run the packed actor+critic MLP (and optional fused log-prob quadratic
    form) over x.  Returns the (batch, OUT_PAD) f32 output slab."""
    batch, d = x.shape
    compute_dtype = w1.dtype
    row_align = 16 if compute_dtype == jnp.bfloat16 else 8

    tb, b_pad = _choose_batch_tile(batch, tile_b, row_align)

    # Row padding only when unavoidable; the feature dim is never padded.
    if b_pad != batch:
        x = jnp.pad(x, ((0, b_pad - batch), (0, 0)))
        if actions is not None:
            actions = jnp.pad(actions, ((0, b_pad - batch), (0, 0)))

    grid = (b_pad // tb,)
    const2 = lambda i: (0, 0)
    const3 = lambda i: (0, 0, 0)

    in_specs = [
        pl.BlockSpec((tb, d), lambda i: (i, 0)),      # x: full-extent last dim
        pl.BlockSpec(w1.shape, const2),               # VMEM-resident weights
        pl.BlockSpec(w_rest.shape, const3),
        pl.BlockSpec(b_all.shape, const3),
    ]
    args = [x, w1, w_rest, b_all]
    fuse_logprob = actions is not None
    if fuse_logprob:
        in_specs.append(pl.BlockSpec((tb, actions.shape[1]), lambda i: (i, 0)))
        in_specs.append(pl.BlockSpec(inv_diag.shape, const2))
        args += [actions, inv_diag]

    out_spec = pl.BlockSpec((tb, OUT_PAD), lambda i: (i, 0))

    slab = pl.pallas_call(
        _make_kernel(n_rest=w_rest.shape[0], act_dim=act_dim,
                     fuse_logprob=fuse_logprob),
        out_shape=jax.ShapeDtypeStruct((b_pad, OUT_PAD), jnp.float32),
        grid=grid,
        in_specs=in_specs,
        out_specs=out_spec,
        compiler_params=pltpu.CompilerParams(
            dimension_semantics=("parallel",)),
    )(*args)
    return slab[:batch]


# ----------------------------------------------------------------------------
# Parameter construction + block-diagonal packing (build time, hoisted)
# ----------------------------------------------------------------------------
def _orthogonal(key, in_dim, out_dim, gain):
    # PyTorch orthogonal_ on weight (out, in); we store the transpose (in, out).
    w_torch_layout = jax.nn.initializers.orthogonal(scale=gain)(
        key, (out_dim, in_dim), jnp.float32)
    return w_torch_layout.T


def make_actor_critic_params(key, obs_dim, act_dim, hidden, initial_std):
    """Logical (unpadded) actor / critic params [(W(in,out), b)] and log_std."""
    n_layers = len(hidden) + 1
    keys = jax.random.split(key, 4 * n_layers)
    gains_actor = [np.sqrt(2.0)] * len(hidden) + [0.01]
    gains_critic = [np.sqrt(2.0)] * len(hidden) + [1.0]

    def build(gains, out_last, key_offset):
        dims = [obs_dim] + list(hidden) + [out_last]
        params = []
        for i in range(n_layers):
            kw = keys[key_offset + 2 * i]
            kb = keys[key_offset + 2 * i + 1]
            w = _orthogonal(kw, dims[i], dims[i + 1], gains[i])
            bound = 1.0 / np.sqrt(dims[i])          # torch Linear bias init
            b = jax.random.uniform(kb, (dims[i + 1],), jnp.float32,
                                   minval=-bound, maxval=bound)
            params.append((w, b))
        return params

    actor_params = build(gains_actor, act_dim, 0)
    critic_params = build(gains_critic, 1, 2 * n_layers)
    log_std = jnp.full((act_dim,), np.log(initial_std), dtype=jnp.float32)
    return actor_params, critic_params, log_std


def pack_actor_critic_params(actor_params, critic_params, act_dim, *,
                             compute_dtype=jnp.bfloat16):
    """Pack actor + critic as ONE block-diagonal 128-lane MLP (build time).

    Hidden layer i: actor units lanes [0, Ha_i), critic units lanes
    [Ha_i, Ha_i+Hc_i).  Final layer: actor mean lanes [0, act_dim), critic
    value lane act_dim; lane act_dim+1 reserved for the fused log-prob term.
    All other lanes are exactly zero (SELU(0)=0 keeps them zero).
    Returns (w1, w_rest, b_all) with w1/w_rest cast to compute_dtype.
    """
    n_layers = len(actor_params)
    assert len(critic_params) == n_layers
    obs_dim = actor_params[0][0].shape[0]
    assert critic_params[0][0].shape[0] == obs_dim, \
        "asymmetric=True (critic on states) not supported by this packing"

    a_out = [w.shape[1] for w, _ in actor_params]
    c_out = [w.shape[1] for w, _ in critic_params]
    assert a_out[-1] == act_dim and c_out[-1] == 1
    assert act_dim + 2 <= OUT_PAD, "need lanes for value and log-prob"

    # Critic lane offset at the OUTPUT of each layer.
    offs = []
    for i in range(n_layers):
        if i == n_layers - 1:
            offs.append(act_dim)
        else:
            assert a_out[i] + c_out[i] <= LANE, \
                "combined hidden width must fit in 128 lanes"
            offs.append(a_out[i])
        assert offs[i] >= a_out[i]          # actor / critic lanes never overlap

    w1 = np.zeros((obs_dim, LANE), np.float32)
    w1[:, :a_out[0]] = np.asarray(actor_params[0][0])
    w1[:, offs[0]:offs[0] + c_out[0]] = np.asarray(critic_params[0][0])

    b_all = np.zeros((n_layers, 1, LANE), np.float32)
    b_all[0, 0, :a_out[0]] = np.asarray(actor_params[0][1])
    b_all[0, 0, offs[0]:offs[0] + c_out[0]] = np.asarray(critic_params[0][1])

    w_rest = np.zeros((n_layers - 1, LANE, LANE), np.float32)
    for i in range(1, n_layers):
        wa, ba = actor_params[i]
        wc, bc = critic_params[i]
        ra, rc = a_out[i - 1], c_out[i - 1]
        in_off, out_off = offs[i - 1], offs[i]
        w_rest[i - 1, :ra, :a_out[i]] = np.asarray(wa)
        w_rest[i - 1, in_off:in_off + rc, out_off:out_off + c_out[i]] = np.asarray(wc)
        b_all[i, 0, :a_out[i]] = np.asarray(ba)
        b_all[i, 0, out_off:out_off + c_out[i]] = np.asarray(bc)

    return (jnp.asarray(w1, dtype=compute_dtype),
            jnp.asarray(w_rest, dtype=compute_dtype),
            jnp.asarray(b_all, dtype=jnp.float32))


# ----------------------------------------------------------------------------
# ActorCritic forward paths (asymmetric=False)
# ----------------------------------------------------------------------------
# TODO(synk): act() (MultivariateNormal.sample) and the asymmetric=True critic
# path are not implemented; only deterministic act_inference / evaluate are.
def act_inference(observations, packed, *, act_dim, tile_b=TILE_B_DEFAULT):
    w1, w_rest, b_all = packed
    slab = fused_forward(observations, w1, w_rest, b_all,
                         act_dim=act_dim, tile_b=tile_b)
    return slab[:, :act_dim]


def evaluate(observations, actions, packed, log_std, *, act_dim,
             tile_b=TILE_B_DEFAULT):
    w1, w_rest, b_all = packed
    # Exactly as the module: scale_tril = diag(exp(log_std) * exp(log_std)).
    diag = jnp.exp(log_std) * jnp.exp(log_std)
    inv_diag = (1.0 / diag)[None, :]                      # (1, act_dim)

    slab = fused_forward(observations, w1, w_rest, b_all,
                         actions=actions, inv_diag=inv_diag,
                         act_dim=act_dim, tile_b=tile_b)
    actions_mean = slab[:, :act_dim]
    value = slab[:, act_dim:act_dim + 1]
    quad_half = slab[:, act_dim + 1]                      # kernel: -0.5*sum(z^2)

    d = float(act_dim)
    actions_log_prob = (quad_half - jnp.sum(jnp.log(diag))
                        - 0.5 * d * jnp.log(2.0 * jnp.pi))
    entropy = 0.5 * d * (1.0 + jnp.log(2.0 * jnp.pi)) + jnp.sum(jnp.log(diag))
    entropy = jnp.broadcast_to(entropy, (observations.shape[0],))
    log_std_rep = jnp.broadcast_to(log_std[None, :],
                                   (observations.shape[0], act_dim))
    return actions_log_prob, entropy, value, actions_mean, log_std_rep


# ----------------------------------------------------------------------------
# Pure numpy (float64) reference for correctness checks
# ----------------------------------------------------------------------------
def _mlp_ref(x, params):
    h = np.asarray(x, np.float64)
    n = len(params)
    for i, (w, b) in enumerate(params):
        h = h @ np.asarray(w, np.float64) + np.asarray(b, np.float64)
        if i < n - 1:
            h = SELU_SCALE * np.where(
                h > 0, h, SELU_ALPHA * np.expm1(np.minimum(h, 0.0)))
    return h


if __name__ == "__main__":
    # Small shapes consistent with the module's forward
    batch, obs_dim, act_dim = 8, 32, 8
    hidden = [32, 32, 32]          # model_cfg pi_hid_sizes / vf_hid_sizes
    initial_std = 1.0              # log_std = 0

    key = jax.random.PRNGKey(0)
    kp, kobs, kact = jax.random.split(key, 3)
    actor_params, critic_params, log_std = make_actor_critic_params(
        kp, obs_dim, act_dim, hidden, initial_std)

    # Build-time packing (hoisted out of the per-call graph).
    packed_f32 = pack_actor_critic_params(
        actor_params, critic_params, act_dim, compute_dtype=jnp.float32)
    packed_bf16 = pack_actor_critic_params(
        actor_params, critic_params, act_dim, compute_dtype=jnp.bfloat16)

    observations = jax.random.normal(kobs, (batch, obs_dim), jnp.float32)
    actions = jax.random.normal(kact, (batch, act_dim), jnp.float32)

    # numpy float64 reference
    mean_ref = _mlp_ref(observations, actor_params)
    value_ref = _mlp_ref(observations, critic_params)
    diag_ref = np.exp(np.asarray(log_std, np.float64)) ** 2
    z_ref = (np.asarray(actions, np.float64) - mean_ref) / diag_ref
    logp_ref = (-0.5 * np.sum(z_ref * z_ref, axis=-1)
                - np.sum(np.log(diag_ref)) - 0.5 * act_dim * np.log(2 * np.pi))
    ent_ref = 0.5 * act_dim * (1 + np.log(2 * np.pi)) + np.sum(np.log(diag_ref))

    # ----- f32 path (strict correctness check) -----
    eval_fn = jax.jit(functools.partial(evaluate, act_dim=act_dim))
    logp, ent, value, amean, lsr = eval_fn(observations, actions,
                                           packed_f32, log_std)
    jax.block_until_ready((logp, ent, value, amean, lsr))

    assert amean.shape == (batch, act_dim)
    assert value.shape == (batch, 1)
    assert logp.shape == (batch,)
    assert ent.shape == (batch,)
    assert lsr.shape == (batch, act_dim)
    assert np.allclose(np.asarray(amean), mean_ref, atol=2e-3)
    assert np.allclose(np.asarray(value), value_ref, atol=1e-2, rtol=2e-3)
    assert np.allclose(np.asarray(logp), logp_ref, atol=2e-2)
    assert np.allclose(np.asarray(ent), np.full((batch,), ent_ref), atol=1e-4)
    assert np.allclose(np.asarray(lsr), np.asarray(log_std)[None, :])

    # ----- act_inference (actor only, same packed weights) -----
    infer_fn = jax.jit(functools.partial(act_inference, act_dim=act_dim))
    amean_inf = infer_fn(observations, packed_f32)
    jax.block_until_ready(amean_inf)
    assert np.allclose(np.asarray(amean_inf), mean_ref, atol=2e-3)

    # ----- bf16 MXU fast path (default dtype) — loose-tolerance check -----
    logp_b, ent_b, value_b, amean_b, _ = jax.block_until_ready(
        eval_fn(observations, actions, packed_bf16, log_std))
    assert np.allclose(np.asarray(amean_b), mean_ref, atol=1e-2)
    assert np.allclose(np.asarray(value_b), value_ref, atol=1e-1, rtol=5e-2)
    assert np.allclose(np.asarray(logp_b), logp_ref, atol=2e-1, rtol=5e-2)
    assert np.all(np.isfinite(np.asarray(value_b)))
    assert np.all(np.isfinite(np.asarray(logp_b)))

    print("KERNEL_OK")
</pallas_src>

<mosaic_0001>
module attributes {stable_mosaic.version = 11 : i64} {
  func.func @kernel(%arg0: i32, %arg1: memref<8x32xf32, #tpu.memory_space<vmem>>, %arg2: memref<32x128xf32, #tpu.memory_space<vmem>>, %arg3: memref<3x128x128xf32, #tpu.memory_space<vmem>>, %arg4: memref<4x1x128xf32, #tpu.memory_space<vmem>>, %arg5: memref<8x8xf32, #tpu.memory_space<vmem>>, %arg6: memref<1x8xf32, #tpu.memory_space<vmem>>, %arg7: memref<8x128xf32, #tpu.memory_space<vmem>>) attributes {dimension_semantics = [#tpu.dimension_semantics<parallel>], iteration_bounds = array<i64: 1>, scalar_prefetch = 0 : i64, scratch_operands = 0 : i64, tpu.core_type = #tpu.core_type<tc>, window_params = [{transform_indices = @transform_0, window_bounds = array<i64: 8, 32>}, {pipeline_mode = #tpu.pipeline_mode<synchronous>, transform_indices = @transform_1, window_bounds = array<i64: 32, 128>}, {pipeline_mode = #tpu.pipeline_mode<synchronous>, transform_indices = @transform_2, window_bounds = array<i64: 3, 128, 128>}, {pipeline_mode = #tpu.pipeline_mode<synchronous>, transform_indices = @transform_3, window_bounds = array<i64: 4, 1, 128>}, {transform_indices = @transform_4, window_bounds = array<i64: 8, 8>}, {pipeline_mode = #tpu.pipeline_mode<synchronous>, transform_indices = @transform_5, window_bounds = array<i64: 1, 8>}, {transform_indices = @transform_6, window_bounds = array<i64: 8, 128>}]} {
    %c0 = arith.constant 0 : index
    %c0_0 = arith.constant 0 : index
    %0 = vector.load %arg1[%c0, %c0_0] : memref<8x32xf32, #tpu.memory_space<vmem>>, vector<8x32xf32>
    %c0_1 = arith.constant 0 : index
    %c0_2 = arith.constant 0 : index
    %1 = vector.load %arg2[%c0_1, %c0_2] : memref<32x128xf32, #tpu.memory_space<vmem>>, vector<32x128xf32>
    %cst = arith.constant dense<0.000000e+00> : vector<8x128xf32>
    %2 = tpu.matmul %0, %1, %cst {dimension_numbers = #tpu.dot_dimension_numbers<[1], [0], [0], [1], [0, 0, 1, 1], [], []>} : vector<8x32xf32>, vector<32x128xf32>, vector<8x128xf32> -> vector<8x128xf32>
    %c0_3 = arith.constant 0 : index
    %c0_4 = arith.constant 0 : index
    %c0_5 = arith.constant 0 : index
    %3 = vector.load %arg4[%c0_3, %c0_4, %c0_5] : memref<4x1x128xf32, #tpu.memory_space<vmem>>, vector<1x1x128xf32>
    %4 = vector.shape_cast %3 : vector<1x1x128xf32> to vector<1x128xf32>
    %5 = vector.broadcast %4 : vector<1x128xf32> to vector<8x128xf32>
    %6 = arith.addf %2, %5 : vector<8x128xf32>
    %cst_6 = arith.constant 0.000000e+00 : f32
    %7 = vector.broadcast %cst_6 : f32 to vector<8x128xf32>
    %8 = arith.cmpf ogt, %6, %7 : vector<8x128xf32>
    %cst_7 = arith.constant 0.000000e+00 : f32
    %9 = vector.broadcast %cst_7 : f32 to vector<8x128xf32>
    %10 = arith.minimumf %6, %9 : vector<8x128xf32>
    %11 = math.exp %10 : vector<8x128xf32>
    %cst_8 = arith.constant 1.000000e+00 : f32
    %12 = vector.broadcast %cst_8 : f32 to vector<8x128xf32>
    %13 = arith.subf %11, %12 : vector<8x128xf32>
    %cst_9 = arith.constant 1.67326319 : f32
    %14 = vector.broadcast %cst_9 : f32 to vector<8x128xf32>
    %15 = arith.mulf %14, %13 : vector<8x128xf32>
    %16 = arith.select %8, %6, %15 : vector<8x128xi1>, vector<8x128xf32>
    %cst_10 = arith.constant 1.05070102 : f32
    %17 = vector.broadcast %cst_10 : f32 to vector<8x128xf32>
    %18 = arith.mulf %17, %16 : vector<8x128xf32>
    %c0_11 = arith.constant 0 : index
    %c0_12 = arith.constant 0 : index
    %c0_13 = arith.constant 0 : index
    %19 = vector.load %arg3[%c0_11, %c0_12, %c0_13] : memref<3x128x128xf32, #tpu.memory_space<vmem>>, vector<1x128x128xf32>
    %20 = vector.shape_cast %19 : vector<1x128x128xf32> to vector<128x128xf32>
    %cst_14 = arith.constant dense<0.000000e+00> : vector<8x128xf32>
    %21 = tpu.matmul %18, %20, %cst_14 {dimension_numbers = #tpu.dot_dimension_numbers<[1], [0], [0], [1], [0, 0, 1, 1], [], []>} : vector<8x128xf32>, vector<128x128xf32>, vector<8x128xf32> -> vector<8x128xf32>
    %c1 = arith.constant 1 : index
    %c0_15 = arith.constant 0 : index
    %c0_16 = arith.constant 0 : index
    %22 = vector.load %arg4[%c1, %c0_15, %c0_16] : memref<4x1x128xf32, #tpu.memory_space<vmem>>, vector<1x1x128xf32>
    %23 = vector.shape_cast %22 : vector<1x1x128xf32> to vector<1x128xf32>
    %24 = vector.broadcast %23 : vector<1x128xf32> to vector<8x128xf32>
    %25 = arith.addf %21, %24 : vector<8x128xf32>
    %cst_17 = arith.constant 0.000000e+00 : f32
    %26 = vector.broadcast %cst_17 : f32 to vector<8x128xf32>
    %27 = arith.cmpf ogt, %25, %26 : vector<8x128xf32>
    %cst_18 = arith.constant 0.000000e+00 : f32
    %28 = vector.broadcast %cst_18 : f32 to vector<8x128xf32>
    %29 = arith.minimumf %25, %28 : vector<8x128xf32>
    %30 = math.exp %29 : vector<8x128xf32>
    %cst_19 = arith.constant 1.000000e+00 : f32
    %31 = vector.broadcast %cst_19 : f32 to vector<8x128xf32>
    %32 = arith.subf %30, %31 : vector<8x128xf32>
    %cst_20 = arith.constant 1.67326319 : f32
    %33 = vector.broadcast %cst_20 : f32 to vector<8x128xf32>
    %34 = arith.mulf %33, %32 : vector<8x128xf32>
    %35 = arith.select %27, %25, %34 : vector<8x128xi1>, vector<8x128xf32>
    %cst_21 = arith.constant 1.05070102 : f32
    %36 = vector.broadcast %cst_21 : f32 to vector<8x128xf32>
    %37 = arith.mulf %36, %35 : vector<8x128xf32>
    %c1_22 = arith.constant 1 : index
    %c0_23 = arith.constant 0 : index
    %c0_24 = arith.constant 0 : index
    %38 = vector.load %arg3[%c1_22, %c0_23, %c0_24] : memref<3x128x128xf32, #tpu.memory_space<vmem>>, vector<1x128x128xf32>
    %39 = vector.shape_cast %38 : vector<1x128x128xf32> to vector<128x128xf32>
    %cst_25 = arith.constant dense<0.000000e+00> : vector<8x128xf32>
    %40 = tpu.matmul %37, %39, %cst_25 {dimension_numbers = #tpu.dot_dimension_numbers<[1], [0], [0], [1], [0, 0, 1, 1], [], []>} : vector<8x128xf32>, vector<128x128xf32>, vector<8x128xf32> -> vector<8x128xf32>
    %c2 = arith.constant 2 : index
    %c0_26 = arith.constant 0 : index
    %c0_27 = arith.constant 0 : index
    %41 = vector.load %arg4[%c2, %c0_26, %c0_27] : memref<4x1x128xf32, #tpu.memory_space<vmem>>, vector<1x1x128xf32>
    %42 = vector.shape_cast %41 : vector<1x1x128xf32> to vector<1x128xf32>
    %43 = vector.broadcast %42 : vector<1x128xf32> to vector<8x128xf32>
    %44 = arith.addf %40, %43 : vector<8x128xf32>
    %cst_28 = arith.constant 0.000000e+00 : f32
    %45 = vector.broadcast %cst_28 : f32 to vector<8x128xf32>
    %46 = arith.cmpf ogt, %44, %45 : vector<8x128xf32>
    %cst_29 = arith.constant 0.000000e+00 : f32
    %47 = vector.broadcast %cst_29 : f32 to vector<8x128xf32>
    %48 = arith.minimumf %44, %47 : vector<8x128xf32>
    %49 = math.exp %48 : vector<8x128xf32>
    %cst_30 = arith.constant 1.000000e+00 : f32
    %50 = vector.broadcast %cst_30 : f32 to vector<8x128xf32>
    %51 = arith.subf %49, %50 : vector<8x128xf32>
    %cst_31 = arith.constant 1.67326319 : f32
    %52 = vector.broadcast %cst_31 : f32 to vector<8x128xf32>
    %53 = arith.mulf %52, %51 : vector<8x128xf32>
    %54 = arith.select %46, %44, %53 : vector<8x128xi1>, vector<8x128xf32>
    %cst_32 = arith.constant 1.05070102 : f32
    %55 = vector.broadcast %cst_32 : f32 to vector<8x128xf32>
    %56 = arith.mulf %55, %54 : vector<8x128xf32>
    %c2_33 = arith.constant 2 : index
    %c0_34 = arith.constant 0 : index
    %c0_35 = arith.constant 0 : index
    %57 = vector.load %arg3[%c2_33, %c0_34, %c0_35] : memref<3x128x128xf32, #tpu.memory_space<vmem>>, vector<1x128x128xf32>
    %58 = vector.shape_cast %57 : vector<1x128x128xf32> to vector<128x128xf32>
    %cst_36 = arith.constant dense<0.000000e+00> : vector<8x128xf32>
    %59 = tpu.matmul %56, %58, %cst_36 {dimension_numbers = #tpu.dot_dimension_numbers<[1], [0], [0], [1], [0, 0, 1, 1], [], []>} : vector<8x128xf32>, vector<128x128xf32>, vector<8x128xf32> -> vector<8x128xf32>
    %c3 = arith.constant 3 : index
    %c0_37 = arith.constant 0 : index
    %c0_38 = arith.constant 0 : index
    %60 = vector.load %arg4[%c3, %c0_37, %c0_38] : memref<4x1x128xf32, #tpu.memory_space<vmem>>, vector<1x1x128xf32>
    %61 = vector.shape_cast %60 : vector<1x1x128xf32> to vector<1x128xf32>
    %62 = vector.broadcast %61 : vector<1x128xf32> to vector<8x128xf32>
    %63 = arith.addf %59, %62 : vector<8x128xf32>
    %64 = vector.extract_strided_slice %63 {offsets = [0, 0], sizes = [8, 8], strides = [1, 1]} : vector<8x128xf32> to vector<8x8xf32>
    %c0_39 = arith.constant 0 : index
    %c0_40 = arith.constant 0 : index
    %65 = vector.load %arg5[%c0_39, %c0_40] : memref<8x8xf32, #tpu.memory_space<vmem>>, vector<8x8xf32>
    %66 = arith.subf %65, %64 : vector<8x8xf32>
    %c0_41 = arith.constant 0 : index
    %c0_42 = arith.constant 0 : index
    %67 = vector.load %arg6[%c0_41, %c0_42] : memref<1x8xf32, #tpu.memory_space<vmem>>, vector<1x8xf32>
    %68 = vector.broadcast %67 : vector<1x8xf32> to vector<8x8xf32>
    %69 = arith.mulf %66, %68 : vector<8x8xf32>
    %70 = arith.mulf %69, %69 : vector<8x8xf32>
    %cst_43 = arith.constant dense<0.000000e+00> : vector<8xf32>
    %71 = vector.multi_reduction <add>, %70, %cst_43 [1] : vector<8x8xf32> to vector<8xf32>
    %72 = vector.shape_cast %71 : vector<8xf32> to vector<8x1xf32>
    %73 = tpu.iota {dimensions = array<i32: 1>} : vector<1x128xi32>
    %c9_i32 = arith.constant 9 : i32
    %74 = vector.broadcast %c9_i32 : i32 to vector<1x128xi32>
    %75 = arith.cmpi eq, %73, %74 : vector<1x128xi32>
    %cst_44 = arith.constant -5.000000e-01 : f32
    %76 = vector.broadcast %cst_44 : f32 to vector<8x1xf32>
    %77 = arith.mulf %76, %72 : vector<8x1xf32>
    %cst_45 = arith.constant 0.000000e+00 : f32
    %78 = vector.shape_cast %75 : vector<1x128xi1> to vector<1x128xi1>
    %79 = vector.broadcast %78 : vector<1x128xi1> to vector<8x128xi1>
    %80 = vector.shape_cast %77 : vector<8x1xf32> to vector<8x1xf32>
    %81 = vector.broadcast %80 : vector<8x1xf32> to vector<8x128xf32>
    %82 = vector.broadcast %cst_45 : f32 to vector<8x128xf32>
    %83 = arith.select %79, %81, %82 : vector<8x128xi1>, vector<8x128xf32>
    %84 = arith.addf %63, %83 : vector<8x128xf32>
    %c0_46 = arith.constant 0 : index
    %c0_47 = arith.constant 0 : index
    %85 = vector.load %arg7[%c0_46, %c0_47] : memref<8x128xf32, #tpu.memory_space<vmem>>, vector<8x128xf32>
    tpu.vector_store %arg7[%c0_46, %c0_47], %84 {strides = array<i32>} : memref<8x128xf32, #tpu.memory_space<vmem>>, vector<8x128xf32>,
    return
  }
  func.func @transform_0(%arg0: i32) -> (i32, i32) {
    %c0_i32 = arith.constant 0 : i32
    %c0_i32_0 = arith.constant 0 : i32
    return %arg0, %c0_i32 : i32, i32
  }
  func.func @transform_1(%arg0: i32) -> (i32, i32) {
    %c0_i32 = arith.constant 0 : i32
    %c0_i32_0 = arith.constant 0 : i32
    %c0_i32_1 = arith.constant 0 : i32
    return %c0_i32, %c0_i32_0 : i32, i32
  }
  func.func @transform_2(%arg0: i32) -> (i32, i32, i32) {
    %c0_i32 = arith.constant 0 : i32
    %c0_i32_0 = arith.constant 0 : i32
    %c0_i32_1 = arith.constant 0 : i32
    %c0_i32_2 = arith.constant 0 : i32
    return %c0_i32, %c0_i32_0, %c0_i32_1 : i32, i32, i32
  }
  func.func @transform_3(%arg0: i32) -> (i32, i32, i32) {
    %c0_i32 = arith.constant 0 : i32
    %c0_i32_0 = arith.constant 0 : i32
    %c0_i32_1 = arith.constant 0 : i32
    %c0_i32_2 = arith.constant 0 : i32
    return %c0_i32, %c0_i32_0, %c0_i32_1 : i32, i32, i32
  }
  func.func @transform_4(%arg0: i32) -> (i32, i32) {
    %c0_i32 = arith.constant 0 : i32
    %c0_i32_0 = arith.constant 0 : i32
    return %arg0, %c0_i32 : i32, i32
  }
  func.func @transform_5(%arg0: i32) -> (i32, i32) {
    %c0_i32 = arith.constant 0 : i32
    %c0_i32_0 = arith.constant 0 : i32
    %c0_i32_1 = arith.constant 0 : i32
    return %c0_i32, %c0_i32_0 : i32, i32
  }
  func.func @transform_6(%arg0: i32) -> (i32, i32) {
    %c0_i32 = arith.constant 0 : i32
    %c0_i32_0 = arith.constant 0 : i32
    return %arg0, %c0_i32 : i32, i32
  }
}

</mosaic_0001>

<llo_original>
// kernel: evaluate.1
$region0: #{evaluate.1}
  #allocation0 [shape = 'u32[]', space=smem, size = 0x4, offset = 0x4, fixed_abs, tag = 'smem constant byte address 0x4 - core index']
  #allocation1 [shape = 'u32[144,128]{1,0:T(1,128)}', space=vmem, size = 0x12000, scoped, tag = 'internal scratch']
  %s0 = inlined_call_operand.vmem [shape: f32[8,32], index: 0, kind: input, shape index: {}]
  %s1 = inlined_call_operand.hbm [shape: f32[32,128], index: 1, kind: input, shape index: {}]
  %s2 = inlined_call_operand.hbm [shape: f32[3,128,128], index: 2, kind: input, shape index: {}]
  %s3 = inlined_call_operand.hbm [shape: f32[4,1,128], index: 3, kind: input, shape index: {}]
  %s4 = inlined_call_operand.vmem [shape: f32[8,8], index: 4, kind: input, shape index: {}]
  %s5 = inlined_call_operand.vmem [shape: f32[1,8], index: 5, kind: input, shape index: {}]
  %s6 = inlined_call_operand.vmem [shape: f32[8,128], index: 6, kind: output, shape index: {}]
  %s7 = sld [smem:[#allocation0]]
  $region46: #{evaluate.1} parent=0
    _
  %s9 = ssub.s32 1, %s7
  %s10 = scalar_select 0, %s9, %s7
  $region1: #{evaluate.1} parent=0
    #allocation2 [shape = 'u8[16384]{0}', space=vmem, size = 0x4000, scoped, tag = 'input window, operand 1, single buffered']
    #allocation3 [shape = 's32[1]{0}', space=sflag, size = 0x4, scoped, tag = 'scoped memory for evaluate.1']
    #allocation4 [shape = 'u8[196608]{0}', space=vmem, size = 0x30000, scoped, tag = 'input window, operand 2, single buffered']
    #allocation5 [shape = 's32[1]{0}', space=sflag, size = 0x4, scoped, tag = 'scoped memory for evaluate.1']
    #allocation6 [shape = 'u8[2048]{0}', space=vmem, size = 0x800, scoped, tag = 'input window, operand 3, single buffered']
    %11 = vsyncpa [#allocation3], 0
    %12 = vsyncpa [#allocation5], 0
    // Predicated region
    $region2: #{evaluate.1} parent=1 // pred_check
      _
    $region3: #{evaluate.1} parent=1 // pred_check_branch
      %14 = sbr.rel (0) target = $region5
    $region4: #{evaluate.1} parent=1 // pred_region
      _
    $region5: #{evaluate.1} parent=1 // pred_fallthru
      _
    // Predicated region
    $region6: #{evaluate.1} parent=1 // pred_check
      _
    $region7: #{evaluate.1} parent=1 // pred_check_branch
      %16 = sbr.rel (0) target = $region9
    $region8: #{evaluate.1} parent=1 // pred_region
      %s18 = ssub.s32 512, 512
      %19 = vsyncadd [#allocation3], %s18
      %s20 = sshll.u32 [#allocation2], 4
      %s21 = int_to_ptr.vmem [resolvable:$true] %s20
      %26 = dma.hbm_to_vmem [thread:$0]  %s1, 512, %s21, [#allocation3], 128, 128, 8
    $region9: #{evaluate.1} parent=1 // pred_fallthru
      _
    // Predicated region
    $region10: #{evaluate.1} parent=1 // pred_check
      _
    $region11: #{evaluate.1} parent=1 // pred_check_branch
      %28 = sbr.rel (0) target = $region13
    $region12: #{evaluate.1} parent=1 // pred_region
      %s30 = ssub.s32 6144, 6144
      %31 = vsyncadd [#allocation5], %s30
      %s32 = sshll.u32 [#allocation4], 4
      %s33 = int_to_ptr.vmem [resolvable:$true] %s32
      %38 = dma.hbm_to_vmem [thread:$0]  %s2, 6144, %s33, [#allocation5], 128, 128, 8
    $region13: #{evaluate.1} parent=1 // pred_fallthru
      _
    // Predicated region
    $region14: #{evaluate.1} parent=1 // pred_check
      _
    $region15: #{evaluate.1} parent=1 // pred_check_branch
      %40 = sbr.rel (0) target = $region17
    $region16: #{evaluate.1} parent=1 // pred_region
      %s42 = ssub.s32 64, 64
      %43 = vsyncadd [#allocation5], %s42
      %s44 = sshll.u32 [#allocation6], 4
      %s45 = int_to_ptr.vmem [resolvable:$true] %s44
      %50 = dma.hbm_to_vmem [thread:$0]  %s3, 64, %s45, [#allocation5], 16, 16, 1
    $region17: #{evaluate.1} parent=1 // pred_fallthru
      _
    // Predicated region
    $region18: #{evaluate.1} parent=1 // pred_check
      _
    $region19: #{evaluate.1} parent=1 // pred_check_branch
      %52 = sbr.rel (0) target = $region21
    $region20: #{evaluate.1} parent=1 // pred_region
      _
    $region21: #{evaluate.1} parent=1 // pred_fallthru
      _
    // Predicated region
    $region22: #{evaluate.1} parent=1 // pred_check
      _
    $region23: #{evaluate.1} parent=1 // pred_check_branch
      %54 = sbr.rel (0) target = $region25
    $region24: #{evaluate.1} parent=1 // pred_region
      _
    $region25: #{evaluate.1} parent=1 // pred_fallthru
      _
    // Predicated region
    $region26: #{evaluate.1} parent=1 // pred_check
      _
    $region27: #{evaluate.1} parent=1 // pred_check_branch
      %56 = sbr.rel (0) target = $region29
    $region28: #{evaluate.1} parent=1 // pred_region
      %57 = dma.done [#allocation3], 512
    $region29: #{evaluate.1} parent=1 // pred_fallthru
      _
    // Predicated region
    $region30: #{evaluate.1} parent=1 // pred_check
      _
    $region31: #{evaluate.1} parent=1 // pred_check_branch
      %59 = sbr.rel (0) target = $region33
    $region32: #{evaluate.1} parent=1 // pred_region
      %60 = dma.done [#allocation5], 6144
    $region33: #{evaluate.1} parent=1 // pred_fallthru
      _
    // Predicated region
    $region34: #{evaluate.1} parent=1 // pred_check
      _
    $region35: #{evaluate.1} parent=1 // pred_check_branch
      %62 = sbr.rel (0) target = $region37
    $region36: #{evaluate.1} parent=1 // pred_region
      %63 = dma.done [#allocation5], 64
    $region37: #{evaluate.1} parent=1 // pred_fallthru
      _
    %v64 = vld [vmem:[%s0] sm:$0xff]
    %v65 = vld [vmem:[#allocation2] sm:$0xff]
    %v66 = vld [vmem:[#allocation2 + $0x8] sm:$0xff]
    %v67 = vld [vmem:[#allocation2 + $0x10] sm:$0xff]
    %v68 = vld [vmem:[#allocation2 + $0x18] sm:$0xff]
    %v69 = vld [vmem:[#allocation6] sm:$0x1]
    %v71 = vlaneseq
    %v72 = vshrl.u32 %v71, 7
    %v73 = vsub.s32 0, %v72
    %v74 = vrot.slane %v69, %v73
    %vm76 = vcmask 261120
    %v78 = vsel %vm76, %v64, 0
    %80 = vmatprep.subr.mxu0 0.0
    %81 = vmatpush1.msra.mxu0 %v65
    %82 = vmatprep.subr.mxu0 0.0
    %83 = vmatpush1.msra.mxu0 %v66
    %84 = vmatprep.subr.mxu0 0.0
    %85 = vmatpush1.msra.mxu0 %v67
    %86 = vmatprep.subr.mxu0 0.0
    %87 = vmatpush1.msra.mxu0 %v68
    %88 = vmatprep.subr.mxu0 0.0
    %89 = vmatpush1.msra.mxu0 0.0
    %90 = vmatprep.subr.mxu0 0.0
    %91 = vmatpush1.msra.mxu0 0.0
    %92 = vmatprep.subr.mxu0 0.0
    %93 = vmatpush1.msra.mxu0 0.0
    %94 = vmatprep.subr.mxu0 0.0
    %95 = vmatpush1.msra.mxu0 0.0
    %96 = vmatprep.subr.mxu0 0.0
    %97 = vmatpush1.msra.mxu0 0.0
    %98 = vmatprep.subr.mxu0 0.0
    %99 = vmatpush1.msra.mxu0 0.0
    %100 = vmatprep.subr.mxu0 0.0
    %101 = vmatpush1.msra.mxu0 0.0
    %102 = vmatprep.subr.mxu0 0.0
    %103 = vmatpush1.msra.mxu0 0.0
    %104 = vmatprep.subr.mxu0 0.0
    %105 = vmatpush1.msra.mxu0 0.0
    %106 = vmatprep.subr.mxu0 0.0
    %107 = vmatpush1.msra.mxu0 0.0
    %108 = vmatprep.subr.mxu0 0.0
    %109 = vmatpush1.msra.mxu0 0.0
    %110 = vmatprep.subr.mxu0 0.0
    %111 = vmatpush1.msra.mxu0 0.0
    %112 = vmatprep.subr.mxu0 0.0
    %113 = vmatpush1.msra.mxu0 0.0
    %114 = vmatprep.subr.mxu0 0.0
    %115 = vmatpush1.msra.mxu0 0.0
    %116 = vmatprep.subr.mxu0 0.0
    %117 = vmatpush1.msra.mxu0 0.0
    %118 = vmatprep.subr.mxu0 0.0
    %119 = vmatpush1.msra.mxu0 0.0
    %120 = vmatprep.subr.mxu0 0.0
    %121 = vmatpush1.msra.mxu0 0.0
    %122 = vmatprep.subr.mxu0 0.0
    %123 = vmatpush1.msra.mxu0 0.0
    %124 = vmatprep.subr.mxu0 0.0
    %125 = vmatpush1.msra.mxu0 0.0
    %126 = vmatprep.subr.mxu0 0.0
    %127 = vmatpush1.msra.mxu0 0.0
    %128 = vmatprep.subr.mxu0 0.0
    %129 = vmatpush1.msra.mxu0 0.0
    %130 = vmatprep.subr.mxu0 0.0
    %131 = vmatpush1.msra.mxu0 0.0
    %132 = vmatprep.subr.mxu0 0.0
    %133 = vmatpush1.msra.mxu0 0.0
    %134 = vmatprep.subr.mxu0 0.0
    %135 = vmatpush1.msra.mxu0 0.0
    %136 = vmatprep.subr.mxu0 0.0
    %137 = vmatpush1.msra.mxu0 0.0
    %138 = vmatprep.subr.mxu0 0.0
    %139 = vmatpush1.msra.mxu0 0.0
    %140 = vmatprep.subr.mxu0 0.0
    %141 = vmatpush1.msra.mxu0 0.0
    %142 = vmatprep.subr.mxu0 0.0
    %143 = vmatpush1.msra.mxu0 0.0
    %144 = vmatprep.mubr.f32.mxu0 0.0
    %145 = vmatmul.mubr.f32.gmra.mrb[0].mxu0 %v78
    %v146 = vpop.f32.mrb[0].mxu0
    %v147 = vadd.f32 %v74, %v146
    %v148 = vpop.f32.mrb[0].mxu0
    %149 = vdwg.mxu0
    %vm150 = vcmp.gt.f32.partialorder %v147, 0.0
    %v151 = vmin.f32 %v147, 0.0
    %v152 = vmul.f32 %v151, 1.442695
    %v153 = vpow.pop %v152
    %v154 = vsub.f32 %v153, 1.0
    %v155 = vmul.f32 %v154, 1.6732632
    %v156 = vsel %vm150, %v147, %v155
    %v157 = vmul.f32 %v156, 1.050701
    %v158 = vld [vmem:[#allocation4] sm:$0xff]
    %v159 = vld [vmem:[#allocation4 + $0x8] sm:$0xff]
    %v160 = vld [vmem:[#allocation4 + $0x10] sm:$0xff]
    %v161 = vld [vmem:[#allocation4 + $0x18] sm:$0xff]
    %v162 = vld [vmem:[#allocation4 + $0x20] sm:$0xff]
    %v163 = vld [vmem:[#allocation4 + $0x28] sm:$0xff]
    %v164 = vld [vmem:[#allocation4 + $0x30] sm:$0xff]
    %v165 = vld [vmem:[#allocation4 + $0x38] sm:$0xff]
    %v166 = vld [vmem:[#allocation4 + $0x40] sm:$0xff]
    %v167 = vld [vmem:[#allocation4 + $0x48] sm:$0xff]
    %v168 = vld [vmem:[#allocation4 + $0x50] sm:$0xff]
    %v169 = vld [vmem:[#allocation4 + $0x58] sm:$0xff]
    %v170 = vld [vmem:[#allocation4 + $0x60] sm:$0xff]
    %v171 = vld [vmem:[#allocation4 + $0x68] sm:$0xff]
    %v172 = vld [vmem:[#allocation4 + $0x70] sm:$0xff]
    %v173 = vld [vmem:[#allocation4 + $0x78] sm:$0xff]
    %s174 = scalar_lea.vmem [#allocation6], 1
    %v175 = vld [vmem:[%s174] sm:$0x1]
    %v177 = vlaneseq
    %v178 = vshrl.u32 %v177, 7
    %v179 = vsub.s32 0, %v178
    %v180 = vrot.slane %v175, %v179
    %182 = vmatprep.subr.mxu0 0.0
    %183 = vmatpush1.msra.mxu0 %v158
    %184 = vmatprep.subr.mxu0 0.0
    %185 = vmatpush1.msra.mxu0 %v159
    %186 = vmatprep.subr.mxu0 0.0
    %187 = vmatpush1.msra.mxu0 %v160
    %188 = vmatprep.subr.mxu0 0.0
    %189 = vmatpush1.msra.mxu0 %v161
    %190 = vmatprep.subr.mxu0 0.0
    %191 = vmatpush1.msra.mxu0 %v162
    %192 = vmatprep.subr.mxu0 0.0
    %193 = vmatpush1.msra.mxu0 %v163
    %194 = vmatprep.subr.mxu0 0.0
    %195 = vmatpush1.msra.mxu0 %v164
    %196 = vmatprep.subr.mxu0 0.0
    %197 = vmatpush1.msra.mxu0 %v165
    %198 = vmatprep.subr.mxu0 0.0
    %199 = vmatpush1.msra.mxu0 %v166
    %200 = vmatprep.subr.mxu0 0.0
    %201 = vmatpush1.msra.mxu0 %v167
    %202 = vmatprep.subr.mxu0 0.0
    %203 = vmatpush1.msra.mxu0 %v168
    %204 = vmatprep.subr.mxu0 0.0
    %205 = vmatpush1.msra.mxu0 %v169
    %206 = vmatprep.subr.mxu0 0.0
    %207 = vmatpush1.msra.mxu0 %v170
    %208 = vmatprep.subr.mxu0 0.0
    %209 = vmatpush1.msra.mxu0 %v171
    %210 = vmatprep.subr.mxu0 0.0
    %211 = vmatpush1.msra.mxu0 %v172
    %212 = vmatprep.subr.mxu0 0.0
    %213 = vmatpush1.msra.mxu0 %v173
    %214 = vmatprep.subr.mxu0 0.0
    %215 = vmatpush1.msra.mxu0 0.0
    %216 = vmatprep.subr.mxu0 0.0
    %217 = vmatpush1.msra.mxu0 0.0
    %218 = vmatprep.subr.mxu0 0.0
    %219 = vmatpush1.msra.mxu0 0.0
    %220 = vmatprep.subr.mxu0 0.0
    %221 = vmatpush1.msra.mxu0 0.0
    %222 = vmatprep.subr.mxu0 0.0
    %223 = vmatpush1.msra.mxu0 0.0
    %224 = vmatprep.subr.mxu0 0.0
    %225 = vmatpush1.msra.mxu0 0.0
    %226 = vmatprep.subr.mxu0 0.0
    %227 = vmatpush1.msra.mxu0 0.0
    %228 = vmatprep.subr.mxu0 0.0
    %229 = vmatpush1.msra.mxu0 0.0
    %230 = vmatprep.subr.mxu0 0.0
    %231 = vmatpush1.msra.mxu0 0.0
    %232 = vmatprep.subr.mxu0 0.0
    %233 = vmatpush1.msra.mxu0 0.0
    %234 = vmatprep.subr.mxu0 0.0
    %235 = vmatpush1.msra.mxu0 0.0
    %236 = vmatprep.subr.mxu0 0.0
    %237 = vmatpush1.msra.mxu0 0.0
    %238 = vmatprep.subr.mxu0 0.0
    %239 = vmatpush1.msra.mxu0 0.0
    %240 = vmatprep.subr.mxu0 0.0
    %241 = vmatpush1.msra.mxu0 0.0
    %242 = vmatprep.subr.mxu0 0.0
    %243 = vmatpush1.msra.mxu0 0.0
    %244 = vmatprep.subr.mxu0 0.0
    %245 = vmatpush1.msra.mxu0 0.0
    %246 = vmatprep.mubr.f32.mxu0 0.0
    %247 = vmatmul.mubr.f32.gmra.mrb[0].mxu0 %v157
    %v248 = vpop.f32.mrb[0].mxu0
    %v249 = vadd.f32 %v180, %v248
    %v250 = vpop.f32.mrb[0].mxu0
    %251 = vdwg.mxu0
    %vm252 = vcmp.gt.f32.partialorder %v249, 0.0
    %v253 = vmin.f32 %v249, 0.0
    %v254 = vmul.f32 %v253, 1.442695
    %v255 = vpow.pop %v254
    %v256 = vsub.f32 %v255, 1.0
    %v257 = vmul.f32 %v256, 1.6732632
    %v258 = vsel %vm252, %v249, %v257
    %v259 = vmul.f32 %v258, 1.050701
    %s260 = scalar_lea.vmem [#allocation4], 128
    %v261 = vld [vmem:[%s260] sm:$0xff]
    %v262 = vld [vmem:[%s260 + $0x8] sm:$0xff]
    %v263 = vld [vmem:[%s260 + $0x10] sm:$0xff]
    %v264 = vld [vmem:[%s260 + $0x18] sm:$0xff]
    %v265 = vld [vmem:[%s260 + $0x20] sm:$0xff]
    %v266 = vld [vmem:[%s260 + $0x28] sm:$0xff]
    %v267 = vld [vmem:[%s260 + $0x30] sm:$0xff]
    %v268 = vld [vmem:[%s260 + $0x38] sm:$0xff]
    %v269 = vld [vmem:[%s260 + $0x40] sm:$0xff]
    %v270 = vld [vmem:[%s260 + $0x48] sm:$0xff]
    %v271 = vld [vmem:[%s260 + $0x50] sm:$0xff]
    %v272 = vld [vmem:[%s260 + $0x58] sm:$0xff]
    %v273 = vld [vmem:[%s260 + $0x60] sm:$0xff]
    %v274 = vld [vmem:[%s260 + $0x68] sm:$0xff]
    %v275 = vld [vmem:[%s260 + $0x70] sm:$0xff]
    %v276 = vld [vmem:[%s260 + $0x78] sm:$0xff]
    %s277 = scalar_lea.vmem [#allocation6], 2
    %v278 = vld [vmem:[%s277] sm:$0x1]
    %v280 = vlaneseq
    %v281 = vshrl.u32 %v280, 7
    %v282 = vsub.s32 0, %v281
    %v283 = vrot.slane %v278, %v282
    %285 = vmatprep.subr.mxu0 0.0
    %286 = vmatpush1.msra.mxu0 %v261
    %287 = vmatprep.subr.mxu0 0.0
    %288 = vmatpush1.msra.mxu0 %v262
    %289 = vmatprep.subr.mxu0 0.0
    %290 = vmatpush1.msra.mxu0 %v263
    %291 = vmatprep.subr.mxu0 0.0
    %292 = vmatpush1.msra.mxu0 %v264
    %293 = vmatprep.subr.mxu0 0.0
    %294 = vmatpush1.msra.mxu0 %v265
    %295 = vmatprep.subr.mxu0 0.0
    %296 = vmatpush1.msra.mxu0 %v266
    %297 = vmatprep.subr.mxu0 0.0
    %298 = vmatpush1.msra.mxu0 %v267
    %299 = vmatprep.subr.mxu0 0.0
    %300 = vmatpush1.msra.mxu0 %v268
    %301 = vmatprep.subr.mxu0 0.0
    %302 = vmatpush1.msra.mxu0 %v269
    %303 = vmatprep.subr.mxu0 0.0
    %304 = vmatpush1.msra.mxu0 %v270
    %305 = vmatprep.subr.mxu0 0.0
    %306 = vmatpush1.msra.mxu0 %v271
    %307 = vmatprep.subr.mxu0 0.0
    %308 = vmatpush1.msra.mxu0 %v272
    %309 = vmatprep.subr.mxu0 0.0
    %310 = vmatpush1.msra.mxu0 %v273
    %311 = vmatprep.subr.mxu0 0.0
    %312 = vmatpush1.msra.mxu0 %v274
    %313 = vmatprep.subr.mxu0 0.0
    %314 = vmatpush1.msra.mxu0 %v275
    %315 = vmatprep.subr.mxu0 0.0
    %316 = vmatpush1.msra.mxu0 %v276
    %317 = vmatprep.subr.mxu0 0.0
    %318 = vmatpush1.msra.mxu0 0.0
    %319 = vmatprep.subr.mxu0 0.0
    %320 = vmatpush1.msra.mxu0 0.0
    %321 = vmatprep.subr.mxu0 0.0
    %322 = vmatpush1.msra.mxu0 0.0
    %323 = vmatprep.subr.mxu0 0.0
    %324 = vmatpush1.msra.mxu0 0.0
    %325 = vmatprep.subr.mxu0 0.0
    %326 = vmatpush1.msra.mxu0 0.0
    %327 = vmatprep.subr.mxu0 0.0
    %328 = vmatpush1.msra.mxu0 0.0
    %329 = vmatprep.subr.mxu0 0.0
    %330 = vmatpush1.msra.mxu0 0.0
    %331 = vmatprep.subr.mxu0 0.0
    %332 = vmatpush1.msra.mxu0 0.0
    %333 = vmatprep.subr.mxu0 0.0
    %334 = vmatpush1.msra.mxu0 0.0
    %335 = vmatprep.subr.mxu0 0.0
    %336 = vmatpush1.msra.mxu0 0.0
    %337 = vmatprep.subr.mxu0 0.0
    %338 = vmatpush1.msra.mxu0 0.0
    %339 = vmatprep.subr.mxu0 0.0
    %340 = vmatpush1.msra.mxu0 0.0
    %341 = vmatprep.subr.mxu0 0.0
    %342 = vmatpush1.msra.mxu0 0.0
    %343 = vmatprep.subr.mxu0 0.0
    %344 = vmatpush1.msra.mxu0 0.0
    %345 = vmatprep.subr.mxu0 0.0
    %346 = vmatpush1.msra.mxu0 0.0
    %347 = vmatprep.subr.mxu0 0.0
    %348 = vmatpush1.msra.mxu0 0.0
    %349 = vmatprep.mubr.f32.mxu0 0.0
    %350 = vmatmul.mubr.f32.gmra.mrb[0].mxu0 %v259
    %v351 = vpop.f32.mrb[0].mxu0
    %v352 = vadd.f32 %v283, %v351
    %v353 = vpop.f32.mrb[0].mxu0
    %354 = vdwg.mxu0
    %vm355 = vcmp.gt.f32.partialorder %v352, 0.0
    %v356 = vmin.f32 %v352, 0.0
    %v357 = vmul.f32 %v356, 1.442695
    %v358 = vpow.pop %v357
    %v359 = vsub.f32 %v358, 1.0
    %v360 = vmul.f32 %v359, 1.6732632
    %v361 = vsel %vm355, %v352, %v360
    %v362 = vmul.f32 %v361, 1.050701
    %s363 = scalar_lea.vmem [#allocation4], 256
    %v364 = vld [vmem:[%s363] sm:$0xff]
    %v365 = vld [vmem:[%s363 + $0x8] sm:$0xff]
    %v366 = vld [vmem:[%s363 + $0x10] sm:$0xff]
    %v367 = vld [vmem:[%s363 + $0x18] sm:$0xff]
    %v368 = vld [vmem:[%s363 + $0x20] sm:$0xff]
    %v369 = vld [vmem:[%s363 + $0x28] sm:$0xff]
    %v370 = vld [vmem:[%s363 + $0x30] sm:$0xff]
    %v371 = vld [vmem:[%s363 + $0x38] sm:$0xff]
    %v372 = vld [vmem:[%s363 + $0x40] sm:$0xff]
    %v373 = vld [vmem:[%s363 + $0x48] sm:$0xff]
    %v374 = vld [vmem:[%s363 + $0x50] sm:$0xff]
    %v375 = vld [vmem:[%s363 + $0x58] sm:$0xff]
    %v376 = vld [vmem:[%s363 + $0x60] sm:$0xff]
    %v377 = vld [vmem:[%s363 + $0x68] sm:$0xff]
    %v378 = vld [vmem:[%s363 + $0x70] sm:$0xff]
    %v379 = vld [vmem:[%s363 + $0x78] sm:$0xff]
    %s380 = scalar_lea.vmem [#allocation6], 3
    %v381 = vld [vmem:[%s380] sm:$0x1]
    %v383 = vlaneseq
    %v384 = vshrl.u32 %v383, 7
    %v385 = vsub.s32 0, %v384
    %v386 = vrot.slane %v381, %v385
    %388 = vmatprep.subr.mxu0 0.0
    %389 = vmatpush1.msra.mxu0 %v364
    %390 = vmatprep.subr.mxu0 0.0
    %391 = vmatpush1.msra.mxu0 %v365
    %392 = vmatprep.subr.mxu0 0.0
    %393 = vmatpush1.msra.mxu0 %v366
    %394 = vmatprep.subr.mxu0 0.0
    %395 = vmatpush1.msra.mxu0 %v367
    %396 = vmatprep.subr.mxu0 0.0
    %397 = vmatpush1.msra.mxu0 %v368
    %398 = vmatprep.subr.mxu0 0.0
    %399 = vmatpush1.msra.mxu0 %v369
    %400 = vmatprep.subr.mxu0 0.0
    %401 = vmatpush1.msra.mxu0 %v370
    %402 = vmatprep.subr.mxu0 0.0
    %403 = vmatpush1.msra.mxu0 %v371
    %404 = vmatprep.subr.mxu0 0.0
    %405 = vmatpush1.msra.mxu0 %v372
    %406 = vmatprep.subr.mxu0 0.0
    %407 = vmatpush1.msra.mxu0 %v373
    %408 = vmatprep.subr.mxu0 0.0
    %409 = vmatpush1.msra.mxu0 %v374
    %410 = vmatprep.subr.mxu0 0.0
    %411 = vmatpush1.msra.mxu0 %v375
    %412 = vmatprep.subr.mxu0 0.0
    %413 = vmatpush1.msra.mxu0 %v376
    %414 = vmatprep.subr.mxu0 0.0
    %415 = vmatpush1.msra.mxu0 %v377
    %416 = vmatprep.subr.mxu0 0.0
    %417 = vmatpush1.msra.mxu0 %v378
    %418 = vmatprep.subr.mxu0 0.0
    %419 = vmatpush1.msra.mxu0 %v379
    %420 = vmatprep.subr.mxu0 0.0
    %421 = vmatpush1.msra.mxu0 0.0
    %422 = vmatprep.subr.mxu0 0.0
    %423 = vmatpush1.msra.mxu0 0.0
    %424 = vmatprep.subr.mxu0 0.0
    %425 = vmatpush1.msra.mxu0 0.0
    %426 = vmatprep.subr.mxu0 0.0
    %427 = vmatpush1.msra.mxu0 0.0
    %428 = vmatprep.subr.mxu0 0.0
    %429 = vmatpush1.msra.mxu0 0.0
    %430 = vmatprep.subr.mxu0 0.0
    %431 = vmatpush1.msra.mxu0 0.0
    %432 = vmatprep.subr.mxu0 0.0
    %433 = vmatpush1.msra.mxu0 0.0
    %434 = vmatprep.subr.mxu0 0.0
    %435 = vmatpush1.msra.mxu0 0.0
    %436 = vmatprep.subr.mxu0 0.0
    %437 = vmatpush1.msra.mxu0 0.0
    %438 = vmatprep.subr.mxu0 0.0
    %439 = vmatpush1.msra.mxu0 0.0
    %440 = vmatprep.subr.mxu0 0.0
    %441 = vmatpush1.msra.mxu0 0.0
    %442 = vmatprep.subr.mxu0 0.0
    %443 = vmatpush1.msra.mxu0 0.0
    %444 = vmatprep.subr.mxu0 0.0
    %445 = vmatpush1.msra.mxu0 0.0
    %446 = vmatprep.subr.mxu0 0.0
    %447 = vmatpush1.msra.mxu0 0.0
    %448 = vmatprep.subr.mxu0 0.0
    %449 = vmatpush1.msra.mxu0 0.0
    %450 = vmatprep.subr.mxu0 0.0
    %451 = vmatpush1.msra.mxu0 0.0
    %452 = vmatprep.mubr.f32.mxu0 0.0
    %453 = vmatmul.mubr.f32.gmra.mrb[0].mxu0 %v362
    %v454 = vpop.f32.mrb[0].mxu0
    %v455 = vadd.f32 %v386, %v454
    %v456 = vpop.f32.mrb[0].mxu0
    %457 = vdwg.mxu0
    %v458 = vld [vmem:[%s4] sm:$0xff]
    %v459 = vsub.f32 %v458, %v455
    %v460 = vld [vmem:[%s5] sm:$0x1]
    %v462 = vlaneseq
    %v463 = vshrl.u32 %v462, 7
    %v464 = vsub.s32 0, %v463
    %v465 = vrot.slane %v460, %v464
    %v467 = vmul.f32 %v459, %v465
    %v468 = vmul.f32 %v467, %v467
    %vm469 = vcmask 64512
    %v470 = vsel %vm469, %v468, 0.0
    %471 = vadd.xlane.f32.xlu0 %v470
    %v472 = vpop.xlane.xlu0 %471
    %v473 = vlaneseq
    %v474 = vand.u32 %v473, 127
    %vm475 = vcmp.eq.s32.totalorder %v474, 9
    %v476 = vmul.f32 %v472, -0.5
    %v477 = vsel %vm475, 1, 0
    %vm478 = vcmp.eq.s32.totalorder %v477, 1
    %v479 = vsel %vm478, %v476, 0.0
    %v480 = vadd.f32 %v455, %v479
    %481 = vst [vmem:[%s6] sm:$0xff] %v480
    // Predicated region
    $region38: #{evaluate.1} parent=1 // pred_check
      _
    $region39: #{evaluate.1} parent=1 // pred_check_branch
      %483 = sbr.rel (0) target = $region41
    $region40: #{evaluate.1} parent=1 // pred_region
      _
    $region41: #{evaluate.1} parent=1 // pred_fallthru
      _
    // Predicated region
    $region42: #{evaluate.1} parent=1 // pred_check
      _
    $region43: #{evaluate.1} parent=1 // pred_check_branch
      %485 = sbr.rel (0) target = $region45
    $region44: #{evaluate.1} parent=1 // pred_region
      _
    $region45: #{evaluate.1} parent=1 // pred_fallthru
      _
    %486 = vsyncpa [#allocation3], 1
    %487 = vsyncpa [#allocation5], 1

</llo_original>
